<compile_context>
chip_gen: v7x
topology: tpu7x:2x2x1
jax: 0.10.0
libtpu: 0.0.40
codegen_flags: <defaults>
</compile_context>

<pallas_src>
import jax
import jax.numpy as jnp
from jax.experimental import pallas as pl
from jax.experimental.pallas import tpu as pltpu

H1 = 512
H2 = 256
_SUBLANE_PACK_BF16 = 16   # bf16 rows pack 16-deep into one vreg sublane group
_MAX_BATCH_TILE = 512


def _round_up(x, m):
    return ((x + m - 1) // m) * m


def _choose_batch_tile(batch):
    """Adaptive batch tile (multiple of 16 rows).

    Tiny batches get a minimal tile; larger batches get tiles up to 512 rows
    while keeping >= 2 grid steps so v7x's two TensorCores both get a share of
    the ("parallel",) batch axis.  v5e/v6e (single TC) simply benefit from the
    larger tiles.
    """
    if batch <= 2 * _SUBLANE_PACK_BF16:
        return _round_up(batch, _SUBLANE_PACK_BF16)
    return min(_MAX_BATCH_TILE,
               _round_up(pl.cdiv(batch, 2), _SUBLANE_PACK_BF16))


def mlp_kernel(x_ref, w1_ref, b1_ref, w2_ref, b2_ref, w3_ref, b3_ref, o_ref):
    # One batch tile of the fused fc1->ReLU->fc2->ReLU->fc3 MLP.
    # Weights/biases are VMEM-resident (constant index_maps).
    x = x_ref[...].astype(jnp.bfloat16)                                # [TB, in]

    # fc1 + ReLU (bf16 x bf16 -> f32 accumulate on the MXU; add/ReLU in f32,
    # result materialized as bf16 to halve the traffic feeding fc2).
    h1 = jnp.dot(x, w1_ref[...], preferred_element_type=jnp.float32)
    h1 = jnp.maximum(h1 + b1_ref[...], 0.0).astype(jnp.bfloat16)       # [TB, 512]

    # dropout (eval mode) == identity

    # fc2 + ReLU
    h2 = jnp.dot(h1, w2_ref[...], preferred_element_type=jnp.float32)
    h2 = jnp.maximum(h2 + b2_ref[...], 0.0).astype(jnp.bfloat16)       # [TB, 256]

    # dropout (eval mode) == identity

    # fc3 logits -- stored unpadded as [TB, num_classes] f32.
    out = jnp.dot(h2, w3_ref[...], preferred_element_type=jnp.float32)
    o_ref[...] = (out + b3_ref[...]).astype(o_ref.dtype)               # [TB, C]


def emotion_classifier_forward(x, params, *, batch_tile=None):
    """x: [B, input_size] float32.  params: dict of w1,b1,w2,b2,w3,b3 (f32,
    weights stored [in, out]).  Returns [B, num_classes] float32 logits."""
    B, in_features = x.shape
    num_classes = params["w3"].shape[1]

    tile = batch_tile if batch_tile is not None else _choose_batch_tile(B)
    Bp = _round_up(B, tile)
    # Only materialize a padded copy of x when the tile doesn't divide B.
    xp = x if Bp == B else jnp.pad(x, ((0, Bp - B), (0, 0)))
    grid = (Bp // tile,)

    # Kernel-side parameter prep: bf16 weights, f32 [1, F] biases (unpadded).
    w1 = params["w1"].astype(jnp.bfloat16)
    w2 = params["w2"].astype(jnp.bfloat16)
    w3 = params["w3"].astype(jnp.bfloat16)
    b1 = params["b1"].reshape(1, -1).astype(jnp.float32)
    b2 = params["b2"].reshape(1, -1).astype(jnp.float32)
    b3 = params["b3"].reshape(1, -1).astype(jnp.float32)

    in_specs = [
        # Activation tile: pipelined along the batch grid axis.
        pl.BlockSpec((tile, in_features), lambda i: (i, 0)),
        # Weights / biases: constant index_map -> fetched once, VMEM-resident.
        pl.BlockSpec(w1.shape, lambda i: (0, 0)),
        pl.BlockSpec(b1.shape, lambda i: (0, 0)),
        pl.BlockSpec(w2.shape, lambda i: (0, 0)),
        pl.BlockSpec(b2.shape, lambda i: (0, 0)),
        pl.BlockSpec(w3.shape, lambda i: (0, 0)),
        pl.BlockSpec(b3.shape, lambda i: (0, 0)),
    ]

    # Advisory cost hint so XLA can schedule neighbouring ops around the call.
    flops = 2 * Bp * (in_features * H1 + H1 * H2 + H2 * num_classes)
    bytes_accessed = (
        xp.size * 4                                   # f32 activations in
        + (w1.size + w2.size + w3.size) * 2           # bf16 weights
        + (b1.size + b2.size + b3.size) * 4           # f32 biases
        + Bp * num_classes * 4                        # f32 logits out
    )
    cost = pl.CostEstimate(flops=flops, transcendentals=0,
                           bytes_accessed=bytes_accessed)

    out = pl.pallas_call(
        mlp_kernel,
        out_shape=jax.ShapeDtypeStruct((Bp, num_classes), jnp.float32),
        grid=grid,
        in_specs=in_specs,
        out_specs=pl.BlockSpec((tile, num_classes), lambda i: (i, 0)),
        compiler_params=pltpu.CompilerParams(
            dimension_semantics=("parallel",),   # megacore sharding on v7x
        ),
        cost_estimate=cost,
    )(xp, w1, b1, w2, b2, w3, b3)

    return out if Bp == B else out[:B]


def init_params(key, input_size, num_classes):
    """Deterministic init mimicking PyTorch nn.Linear default
    (uniform(-1/sqrt(fan_in), 1/sqrt(fan_in))).  Weights stored as [in, out]."""
    def linear(key, fan_in, fan_out):
        kw, kb = jax.random.split(key)
        bound = 1.0 / jnp.sqrt(jnp.float32(fan_in))
        w = jax.random.uniform(kw, (fan_in, fan_out), jnp.float32, -bound, bound)
        b = jax.random.uniform(kb, (fan_out,), jnp.float32, -bound, bound)
        return w, b

    k1, k2, k3 = jax.random.split(key, 3)
    w1, b1 = linear(k1, input_size, H1)
    w2, b2 = linear(k2, H1, H2)
    w3, b3 = linear(k3, H2, num_classes)
    return {"w1": w1, "b1": b1, "w2": w2, "b2": b2, "w3": w3, "b3": b3}


def reference_forward(x, p):
    """Pure-JAX reference mirroring the kernel's bf16-operand / f32-accumulate
    math (weights bf16, intermediates materialized as bf16)."""
    w1 = p["w1"].astype(jnp.bfloat16)
    w2 = p["w2"].astype(jnp.bfloat16)
    w3 = p["w3"].astype(jnp.bfloat16)
    h1 = jnp.dot(x.astype(jnp.bfloat16), w1, preferred_element_type=jnp.float32)
    h1 = jnp.maximum(h1 + p["b1"], 0.0).astype(jnp.bfloat16)
    h2 = jnp.dot(h1, w2, preferred_element_type=jnp.float32)
    h2 = jnp.maximum(h2 + p["b2"], 0.0).astype(jnp.bfloat16)
    return jnp.dot(h2, w3, preferred_element_type=jnp.float32) + p["b3"]


if __name__ == "__main__":
    input_size = 32
    num_classes = 8

    key = jax.random.PRNGKey(0)
    kx, kp = jax.random.split(key)
    params = init_params(kp, input_size, num_classes)

    # Two deterministic smoke tests:
    #  - B=8   : tiny single-tile path (tile=16, grid=1)
    #  - B=300 : multi-tile path with a ragged tail (tile=160, grid=2, 20 pad rows)
    for batch in (8, 300):
        kx, kb = jax.random.split(kx)
        x = jax.random.normal(kb, (batch, input_size), dtype=jnp.float32)

        out = jax.block_until_ready(emotion_classifier_forward(x, params))
        ref = reference_forward(x, params)

        assert out.shape == (batch, num_classes)
        assert jnp.allclose(out, ref, atol=2e-3, rtol=2e-3), (
            f"mismatch vs. reference at batch={batch}")

    print("KERNEL_OK")
</pallas_src>

<mosaic_0001>
module attributes {stable_mosaic.version = 11 : i64} {
  func.func @mlp_kernel(%arg0: i32, %arg1: memref<16x32xf32, #tpu.memory_space<vmem>>, %arg2: memref<32x512xbf16, #tpu.memory_space<vmem>>, %arg3: memref<1x512xf32, #tpu.memory_space<vmem>>, %arg4: memref<512x256xbf16, #tpu.memory_space<vmem>>, %arg5: memref<1x256xf32, #tpu.memory_space<vmem>>, %arg6: memref<256x8xbf16, #tpu.memory_space<vmem>>, %arg7: memref<1x8xf32, #tpu.memory_space<vmem>>, %arg8: memref<16x8xf32, #tpu.memory_space<vmem>>) attributes {dimension_semantics = [#tpu.dimension_semantics<parallel>], iteration_bounds = array<i64: 1>, scalar_prefetch = 0 : i64, scratch_operands = 0 : i64, tpu.core_type = #tpu.core_type<tc>, window_params = [{transform_indices = @transform_0, window_bounds = array<i64: 16, 32>}, {pipeline_mode = #tpu.pipeline_mode<synchronous>, transform_indices = @transform_1, window_bounds = array<i64: 32, 512>}, {pipeline_mode = #tpu.pipeline_mode<synchronous>, transform_indices = @transform_2, window_bounds = array<i64: 1, 512>}, {pipeline_mode = #tpu.pipeline_mode<synchronous>, transform_indices = @transform_3, window_bounds = array<i64: 512, 256>}, {pipeline_mode = #tpu.pipeline_mode<synchronous>, transform_indices = @transform_4, window_bounds = array<i64: 1, 256>}, {pipeline_mode = #tpu.pipeline_mode<synchronous>, transform_indices = @transform_5, window_bounds = array<i64: 256, 8>}, {pipeline_mode = #tpu.pipeline_mode<synchronous>, transform_indices = @transform_6, window_bounds = array<i64: 1, 8>}, {transform_indices = @transform_7, window_bounds = array<i64: 16, 8>}]} {
    %c0 = arith.constant 0 : index
    %c0_0 = arith.constant 0 : index
    %0 = vector.load %arg1[%c0, %c0_0] : memref<16x32xf32, #tpu.memory_space<vmem>>, vector<16x32xf32>
    %1 = arith.truncf %0 : vector<16x32xf32> to vector<16x32xbf16>
    %c0_1 = arith.constant 0 : index
    %c0_2 = arith.constant 0 : index
    %2 = vector.load %arg2[%c0_1, %c0_2] : memref<32x512xbf16, #tpu.memory_space<vmem>>, vector<32x512xbf16>
    %cst = arith.constant dense<0.000000e+00> : vector<16x512xf32>
    %3 = tpu.matmul %1, %2, %cst {dimension_numbers = #tpu.dot_dimension_numbers<[1], [0], [0], [1], [0, 0, 1, 1], [], []>} : vector<16x32xbf16>, vector<32x512xbf16>, vector<16x512xf32> -> vector<16x512xf32>
    %c0_3 = arith.constant 0 : index
    %c0_4 = arith.constant 0 : index
    %4 = vector.load %arg3[%c0_3, %c0_4] : memref<1x512xf32, #tpu.memory_space<vmem>>, vector<1x512xf32>
    %5 = vector.broadcast %4 : vector<1x512xf32> to vector<16x512xf32>
    %6 = arith.addf %3, %5 : vector<16x512xf32>
    %cst_5 = arith.constant 0.000000e+00 : f32
    %7 = vector.broadcast %cst_5 : f32 to vector<16x512xf32>
    %8 = arith.maximumf %6, %7 : vector<16x512xf32>
    %9 = arith.truncf %8 : vector<16x512xf32> to vector<16x512xbf16>
    %c0_6 = arith.constant 0 : index
    %c0_7 = arith.constant 0 : index
    %10 = vector.load %arg4[%c0_6, %c0_7] : memref<512x256xbf16, #tpu.memory_space<vmem>>, vector<512x256xbf16>
    %cst_8 = arith.constant dense<0.000000e+00> : vector<16x256xf32>
    %11 = tpu.matmul %9, %10, %cst_8 {dimension_numbers = #tpu.dot_dimension_numbers<[1], [0], [0], [1], [0, 0, 1, 1], [], []>} : vector<16x512xbf16>, vector<512x256xbf16>, vector<16x256xf32> -> vector<16x256xf32>
    %c0_9 = arith.constant 0 : index
    %c0_10 = arith.constant 0 : index
    %12 = vector.load %arg5[%c0_9, %c0_10] : memref<1x256xf32, #tpu.memory_space<vmem>>, vector<1x256xf32>
    %13 = vector.broadcast %12 : vector<1x256xf32> to vector<16x256xf32>
    %14 = arith.addf %11, %13 : vector<16x256xf32>
    %cst_11 = arith.constant 0.000000e+00 : f32
    %15 = vector.broadcast %cst_11 : f32 to vector<16x256xf32>
    %16 = arith.maximumf %14, %15 : vector<16x256xf32>
    %17 = arith.truncf %16 : vector<16x256xf32> to vector<16x256xbf16>
    %c0_12 = arith.constant 0 : index
    %c0_13 = arith.constant 0 : index
    %18 = vector.load %arg6[%c0_12, %c0_13] : memref<256x8xbf16, #tpu.memory_space<vmem>>, vector<256x8xbf16>
    %cst_14 = arith.constant dense<0.000000e+00> : vector<16x8xf32>
    %19 = tpu.matmul %17, %18, %cst_14 {dimension_numbers = #tpu.dot_dimension_numbers<[1], [0], [0], [1], [0, 0, 1, 1], [], []>} : vector<16x256xbf16>, vector<256x8xbf16>, vector<16x8xf32> -> vector<16x8xf32>
    %c0_15 = arith.constant 0 : index
    %c0_16 = arith.constant 0 : index
    %20 = vector.load %arg7[%c0_15, %c0_16] : memref<1x8xf32, #tpu.memory_space<vmem>>, vector<1x8xf32>
    %21 = vector.broadcast %20 : vector<1x8xf32> to vector<16x8xf32>
    %22 = arith.addf %19, %21 : vector<16x8xf32>
    %c0_17 = arith.constant 0 : index
    %c0_18 = arith.constant 0 : index
    %23 = vector.load %arg8[%c0_17, %c0_18] : memref<16x8xf32, #tpu.memory_space<vmem>>, vector<16x8xf32>
    tpu.vector_store %arg8[%c0_17, %c0_18], %22 {strides = array<i32>} : memref<16x8xf32, #tpu.memory_space<vmem>>, vector<16x8xf32>,
    return
  }
  func.func @transform_0(%arg0: i32) -> (i32, i32) {
    %c0_i32 = arith.constant 0 : i32
    %c0_i32_0 = arith.constant 0 : i32
    return %arg0, %c0_i32 : i32, i32
  }
  func.func @transform_1(%arg0: i32) -> (i32, i32) {
    %c0_i32 = arith.constant 0 : i32
    %c0_i32_0 = arith.constant 0 : i32
    %c0_i32_1 = arith.constant 0 : i32
    return %c0_i32, %c0_i32_0 : i32, i32
  }
  func.func @transform_2(%arg0: i32) -> (i32, i32) {
    %c0_i32 = arith.constant 0 : i32
    %c0_i32_0 = arith.constant 0 : i32
    %c0_i32_1 = arith.constant 0 : i32
    return %c0_i32, %c0_i32_0 : i32, i32
  }
  func.func @transform_3(%arg0: i32) -> (i32, i32) {
    %c0_i32 = arith.constant 0 : i32
    %c0_i32_0 = arith.constant 0 : i32
    %c0_i32_1 = arith.constant 0 : i32
    return %c0_i32, %c0_i32_0 : i32, i32
  }
  func.func @transform_4(%arg0: i32) -> (i32, i32) {
    %c0_i32 = arith.constant 0 : i32
    %c0_i32_0 = arith.constant 0 : i32
    %c0_i32_1 = arith.constant 0 : i32
    return %c0_i32, %c0_i32_0 : i32, i32
  }
  func.func @transform_5(%arg0: i32) -> (i32, i32) {
    %c0_i32 = arith.constant 0 : i32
    %c0_i32_0 = arith.constant 0 : i32
    %c0_i32_1 = arith.constant 0 : i32
    return %c0_i32, %c0_i32_0 : i32, i32
  }
  func.func @transform_6(%arg0: i32) -> (i32, i32) {
    %c0_i32 = arith.constant 0 : i32
    %c0_i32_0 = arith.constant 0 : i32
    %c0_i32_1 = arith.constant 0 : i32
    return %c0_i32, %c0_i32_0 : i32, i32
  }
  func.func @transform_7(%arg0: i32) -> (i32, i32) {
    %c0_i32 = arith.constant 0 : i32
    %c0_i32_0 = arith.constant 0 : i32
    return %arg0, %c0_i32 : i32, i32
  }
}

</mosaic_0001>

<llo_original>
// kernel: tpu_custom_call.1
$region0: #{tpu_custom_call.1}
  #allocation0 [shape = 'u32[]', space=smem, size = 0x4, offset = 0x4, fixed_abs, tag = 'smem constant byte address 0x4 - core index']
  #allocation1 [shape = 'u32[144,128]{1,0:T(1,128)}', space=vmem, size = 0x12000, scoped, tag = 'internal scratch']
  %s0 = inlined_call_operand.vmem [shape: f32[16,32], index: 0, kind: input, shape index: {}]
  %s1 = inlined_call_operand.vmem [shape: bf16[32,512], index: 1, kind: input, shape index: {}]
  %s2 = inlined_call_operand.vmem [shape: f32[1,512], index: 2, kind: input, shape index: {}]
  %s3 = inlined_call_operand.hbm [shape: bf16[512,256], index: 3, kind: input, shape index: {}]
  %s4 = inlined_call_operand.vmem [shape: f32[1,256], index: 4, kind: input, shape index: {}]
  %s5 = inlined_call_operand.vmem [shape: bf16[256,8], index: 5, kind: input, shape index: {}]
  %s6 = inlined_call_operand.vmem [shape: f32[1,8], index: 6, kind: input, shape index: {}]
  %s7 = inlined_call_operand.vmem [shape: f32[16,8], index: 7, kind: output, shape index: {}]
  %s8 = sld [smem:[#allocation0]]
  $region42: #{tpu_custom_call.1} parent=0
    _
  %s10 = ssub.s32 1, %s8
  %s11 = scalar_select 0, %s10, %s8
  $region1: #{tpu_custom_call.1} parent=0
    #allocation2 [shape = 'u8[262144]{0}', space=vmem, size = 0x40000, scoped, tag = 'input window, operand 3, single buffered']
    #allocation3 [shape = 's32[1]{0}', space=sflag, size = 0x4, scoped, tag = 'scoped memory for tpu_custom_call.1']
    %12 = vsyncpa [#allocation3], 0
    // Predicated region
    $region2: #{tpu_custom_call.1} parent=1 // pred_check
      _
    $region3: #{tpu_custom_call.1} parent=1 // pred_check_branch
      %14 = sbr.rel (0) target = $region5
    $region4: #{tpu_custom_call.1} parent=1 // pred_region
      _
    $region5: #{tpu_custom_call.1} parent=1 // pred_fallthru
      _
    // Predicated region
    $region6: #{tpu_custom_call.1} parent=1 // pred_check
      _
    $region7: #{tpu_custom_call.1} parent=1 // pred_check_branch
      %16 = sbr.rel (0) target = $region9
    $region8: #{tpu_custom_call.1} parent=1 // pred_region
      _
    $region9: #{tpu_custom_call.1} parent=1 // pred_fallthru
      _
    // Predicated region
    $region10: #{tpu_custom_call.1} parent=1 // pred_check
      _
    $region11: #{tpu_custom_call.1} parent=1 // pred_check_branch
      %18 = sbr.rel (0) target = $region13
    $region12: #{tpu_custom_call.1} parent=1 // pred_region
      _
    $region13: #{tpu_custom_call.1} parent=1 // pred_fallthru
      _
    // Predicated region
    $region14: #{tpu_custom_call.1} parent=1 // pred_check
      _
    $region15: #{tpu_custom_call.1} parent=1 // pred_check_branch
      %20 = sbr.rel (0) target = $region17
    $region16: #{tpu_custom_call.1} parent=1 // pred_region
      %s22 = ssub.s32 8192, 8192
      %23 = vsyncadd [#allocation3], %s22
      %s24 = sshll.u32 [#allocation2], 4
      %s25 = int_to_ptr.vmem [resolvable:$true] %s24
      %30 = dma.hbm_to_vmem [thread:$0]  %s3, 8192, %s25, [#allocation3], 128, 128, 8
    $region17: #{tpu_custom_call.1} parent=1 // pred_fallthru
      _
    // Predicated region
    $region18: #{tpu_custom_call.1} parent=1 // pred_check
      _
    $region19: #{tpu_custom_call.1} parent=1 // pred_check_branch
      %32 = sbr.rel (0) target = $region21
    $region20: #{tpu_custom_call.1} parent=1 // pred_region
      _
    $region21: #{tpu_custom_call.1} parent=1 // pred_fallthru
      _
    // Predicated region
    $region22: #{tpu_custom_call.1} parent=1 // pred_check
      _
    $region23: #{tpu_custom_call.1} parent=1 // pred_check_branch
      %34 = sbr.rel (0) target = $region25
    $region24: #{tpu_custom_call.1} parent=1 // pred_region
      _
    $region25: #{tpu_custom_call.1} parent=1 // pred_fallthru
      _
    // Predicated region
    $region26: #{tpu_custom_call.1} parent=1 // pred_check
      _
    $region27: #{tpu_custom_call.1} parent=1 // pred_check_branch
      %36 = sbr.rel (0) target = $region29
    $region28: #{tpu_custom_call.1} parent=1 // pred_region
      _
    $region29: #{tpu_custom_call.1} parent=1 // pred_fallthru
      _
    // Predicated region
    $region30: #{tpu_custom_call.1} parent=1 // pred_check
      _
    $region31: #{tpu_custom_call.1} parent=1 // pred_check_branch
      %38 = sbr.rel (0) target = $region33
    $region32: #{tpu_custom_call.1} parent=1 // pred_region
      %39 = dma.done [#allocation3], 8192
    $region33: #{tpu_custom_call.1} parent=1 // pred_fallthru
      _
    %v41 = vld [vmem:[%s0] sm:$0xff]
    %v42 = vld [vmem:[%s0 + $0x8] sm:$0xff]
    %v43 = vpack.c.bf16 %v42, %v41
    %v44 = vld [vmem:[%s1] sm:$0xff]
    %v45 = vld [vmem:[%s1 + $0x8] sm:$0xff]
    %v46 = vld [vmem:[%s1 + $0x10] sm:$0xff]
    %v47 = vld [vmem:[%s1 + $0x18] sm:$0xff]
    %v48 = vld [vmem:[%s1 + $0x20] sm:$0xff]
    %v49 = vld [vmem:[%s1 + $0x28] sm:$0xff]
    %v50 = vld [vmem:[%s1 + $0x30] sm:$0xff]
    %v51 = vld [vmem:[%s1 + $0x38] sm:$0xff]
    %v52 = vld [vmem:[%s2] sm:$0xf]
    %v54 = vlaneseq
    %v55 = vshrl.u32 %v54, 7
    %v56 = vsub.s32 0, %v55
    %v57 = vrot.slane %v52, %v56
    %v58 = vlaneseq
    %v59 = vshrl.u32 %v58, 7
    %v60 = vsub.s32 1, %v59
    %v61 = vrot.slane %v52, %v60
    %v62 = vlaneseq
    %v63 = vshrl.u32 %v62, 7
    %v64 = vsub.s32 2, %v63
    %v65 = vrot.slane %v52, %v64
    %v66 = vlaneseq
    %v67 = vshrl.u32 %v66, 7
    %v68 = vsub.s32 3, %v67
    %v69 = vrot.slane %v52, %v68
    %v82 = vunpack.c.l.b16 %v44
    %v83 = vunpack.c.h.b16 %v44
    %v84 = vunpack.c.l.b16 %v45
    %v85 = vunpack.c.h.b16 %v45
    %v86 = vunpack.c.l.b16 %v46
    %v87 = vunpack.c.h.b16 %v46
    %v88 = vunpack.c.l.b16 %v47
    %v89 = vunpack.c.h.b16 %v47
    %v90 = vunpack.c.l.b16 %v48
    %v91 = vunpack.c.h.b16 %v48
    %v92 = vunpack.c.l.b16 %v49
    %v93 = vunpack.c.h.b16 %v49
    %v94 = vunpack.c.l.b16 %v50
    %v95 = vunpack.c.h.b16 %v50
    %v96 = vunpack.c.l.b16 %v51
    %v97 = vunpack.c.h.b16 %v51
    %v98 = vpack.c.b16 %v86, %v82
    %v99 = vpack.c.b16 %v87, %v83
    %v100 = vpack.c.b16 %v88, %v84
    %v101 = vpack.c.b16 %v89, %v85
    %v102 = vpack.c.b16 %v94, %v90
    %v103 = vpack.c.b16 %v95, %v91
    %v104 = vpack.c.b16 %v96, %v92
    %v105 = vpack.c.b16 %v97, %v93
    %vm114 = vcmask 261120
    %v116 = vsel %vm114, %v43, 0
    %118 = vmatprep.subr.bf16.mxu0 %v99
    %119 = vmatpush1.bf16.msra.mxu0 %v98
    %120 = vmatprep.subr.bf16.mxu0 %v103
    %121 = vmatpush1.bf16.msra.mxu0 %v102
    %122 = vmatprep.subr.bf16.mxu0 0
    %123 = vmatpush1.bf16.msra.mxu0 0
    %124 = vmatprep.subr.bf16.mxu0 0
    %125 = vmatpush1.bf16.msra.mxu0 0
    %126 = vmatprep.subr.bf16.mxu0 0
    %127 = vmatpush1.bf16.msra.mxu0 0
    %128 = vmatprep.subr.bf16.mxu0 0
    %129 = vmatpush1.bf16.msra.mxu0 0
    %130 = vmatprep.subr.bf16.mxu0 0
    %131 = vmatpush1.bf16.msra.mxu0 0
    %132 = vmatprep.subr.bf16.mxu0 0
    %133 = vmatpush1.bf16.msra.mxu0 0
    %134 = vmatprep.subr.bf16.mxu0 0
    %135 = vmatpush1.bf16.msra.mxu0 0
    %136 = vmatprep.subr.bf16.mxu0 0
    %137 = vmatpush1.bf16.msra.mxu0 0
    %138 = vmatprep.subr.bf16.mxu0 0
    %139 = vmatpush1.bf16.msra.mxu0 0
    %140 = vmatprep.subr.bf16.mxu0 0
    %141 = vmatpush1.bf16.msra.mxu0 0
    %142 = vmatprep.subr.bf16.mxu0 0
    %143 = vmatpush1.bf16.msra.mxu0 0
    %144 = vmatprep.subr.bf16.mxu0 0
    %145 = vmatpush1.bf16.msra.mxu0 0
    %146 = vmatprep.subr.bf16.mxu0 0
    %147 = vmatpush1.bf16.msra.mxu0 0
    %148 = vmatprep.subr.bf16.mxu0 0
    %149 = vmatpush1.bf16.msra.mxu0 0
    %150 = vmatprep.mubr.bf16.mxu0 0
    %151 = vmatmul.mubr.bf16.gmra.mrb[0].mxu0 %v116
    %v152 = vpop.f32.mrb[0].mxu0
    %v153 = vadd.f32 %v57, %v152
    %v154 = vpop.f32.mrb[0].mxu0
    %v155 = vadd.f32 %v61, %v154
    %v156 = vpop.f32.mrb[0].mxu0
    %v157 = vadd.f32 %v57, %v156
    %v158 = vpop.f32.mrb[0].mxu0
    %v159 = vadd.f32 %v61, %v158
    %160 = vdwg.mxu0
    %161 = vmatprep.subr.bf16.mxu0 %v101
    %162 = vmatpush1.bf16.msra.mxu0 %v100
    %163 = vmatprep.subr.bf16.mxu0 %v105
    %164 = vmatpush1.bf16.msra.mxu0 %v104
    %165 = vmatprep.subr.bf16.mxu0 0
    %166 = vmatpush1.bf16.msra.mxu0 0
    %167 = vmatprep.subr.bf16.mxu0 0
    %168 = vmatpush1.bf16.msra.mxu0 0
    %169 = vmatprep.subr.bf16.mxu0 0
    %170 = vmatpush1.bf16.msra.mxu0 0
    %171 = vmatprep.subr.bf16.mxu0 0
    %172 = vmatpush1.bf16.msra.mxu0 0
    %173 = vmatprep.subr.bf16.mxu0 0
    %174 = vmatpush1.bf16.msra.mxu0 0
    %175 = vmatprep.subr.bf16.mxu0 0
    %176 = vmatpush1.bf16.msra.mxu0 0
    %177 = vmatprep.subr.bf16.mxu0 0
    %178 = vmatpush1.bf16.msra.mxu0 0
    %179 = vmatprep.subr.bf16.mxu0 0
    %180 = vmatpush1.bf16.msra.mxu0 0
    %181 = vmatprep.subr.bf16.mxu0 0
    %182 = vmatpush1.bf16.msra.mxu0 0
    %183 = vmatprep.subr.bf16.mxu0 0
    %184 = vmatpush1.bf16.msra.mxu0 0
    %185 = vmatprep.subr.bf16.mxu0 0
    %186 = vmatpush1.bf16.msra.mxu0 0
    %187 = vmatprep.subr.bf16.mxu0 0
    %188 = vmatpush1.bf16.msra.mxu0 0
    %189 = vmatprep.subr.bf16.mxu0 0
    %190 = vmatpush1.bf16.msra.mxu0 0
    %191 = vmatprep.subr.bf16.mxu0 0
    %192 = vmatpush1.bf16.msra.mxu0 0
    %193 = vmatprep.mubr.bf16.mxu0 0
    %194 = vmatmul.mubr.bf16.gmra.mrb[0].mxu0 %v116
    %v195 = vpop.f32.mrb[0].mxu0
    %v196 = vadd.f32 %v65, %v195
    %v197 = vpop.f32.mrb[0].mxu0
    %v198 = vadd.f32 %v69, %v197
    %v199 = vpop.f32.mrb[0].mxu0
    %v200 = vadd.f32 %v65, %v199
    %v201 = vpop.f32.mrb[0].mxu0
    %v202 = vadd.f32 %v69, %v201
    %203 = vdwg.mxu0
    %v204 = vmax.f32 %v153, 0.0
    %v205 = vmax.f32 %v155, 0.0
    %v206 = vmax.f32 %v196, 0.0
    %v207 = vmax.f32 %v198, 0.0
    %v208 = vmax.f32 %v157, 0.0
    %v209 = vmax.f32 %v159, 0.0
    %v210 = vmax.f32 %v200, 0.0
    %v211 = vmax.f32 %v202, 0.0
    %v212 = vpack.c.bf16 %v208, %v204
    %v213 = vpack.c.bf16 %v209, %v205
    %v214 = vpack.c.bf16 %v210, %v206
    %v215 = vpack.c.bf16 %v211, %v207
    %v216 = vld [vmem:[#allocation2] sm:$0xff]
    %v217 = vld [vmem:[#allocation2 + $0x8] sm:$0xff]
    %v218 = vld [vmem:[#allocation2 + $0x10] sm:$0xff]
    %v219 = vld [vmem:[#allocation2 + $0x18] sm:$0xff]
    %v220 = vld [vmem:[#allocation2 + $0x20] sm:$0xff]
    %v221 = vld [vmem:[#allocation2 + $0x28] sm:$0xff]
    %v222 = vld [vmem:[#allocation2 + $0x30] sm:$0xff]
    %v223 = vld [vmem:[#allocation2 + $0x38] sm:$0xff]
    %v224 = vld [vmem:[#allocation2 + $0x40] sm:$0xff]
    %v225 = vld [vmem:[#allocation2 + $0x48] sm:$0xff]
    %v226 = vld [vmem:[#allocation2 + $0x50] sm:$0xff]
    %v227 = vld [vmem:[#allocation2 + $0x58] sm:$0xff]
    %v228 = vld [vmem:[#allocation2 + $0x60] sm:$0xff]
    %v229 = vld [vmem:[#allocation2 + $0x68] sm:$0xff]
    %v230 = vld [vmem:[#allocation2 + $0x70] sm:$0xff]
    %v231 = vld [vmem:[#allocation2 + $0x78] sm:$0xff]
    %v232 = vld [vmem:[#allocation2 + $0x80] sm:$0xff]
    %v233 = vld [vmem:[#allocation2 + $0x88] sm:$0xff]
    %v234 = vld [vmem:[#allocation2 + $0x90] sm:$0xff]
    %v235 = vld [vmem:[#allocation2 + $0x98] sm:$0xff]
    %v236 = vld [vmem:[#allocation2 + $0xa0] sm:$0xff]
    %v237 = vld [vmem:[#allocation2 + $0xa8] sm:$0xff]
    %v238 = vld [vmem:[#allocation2 + $0xb0] sm:$0xff]
    %v239 = vld [vmem:[#allocation2 + $0xb8] sm:$0xff]
    %v240 = vld [vmem:[#allocation2 + $0xc0] sm:$0xff]
    %v241 = vld [vmem:[#allocation2 + $0xc8] sm:$0xff]
    %v242 = vld [vmem:[#allocation2 + $0xd0] sm:$0xff]
    %v243 = vld [vmem:[#allocation2 + $0xd8] sm:$0xff]
    %v244 = vld [vmem:[#allocation2 + $0xe0] sm:$0xff]
    %v245 = vld [vmem:[#allocation2 + $0xe8] sm:$0xff]
    %v246 = vld [vmem:[#allocation2 + $0xf0] sm:$0xff]
    %v247 = vld [vmem:[#allocation2 + $0xf8] sm:$0xff]
    %v248 = vld [vmem:[#allocation2 + $0x100] sm:$0xff]
    %v249 = vld [vmem:[#allocation2 + $0x108] sm:$0xff]
    %v250 = vld [vmem:[#allocation2 + $0x110] sm:$0xff]
    %v251 = vld [vmem:[#allocation2 + $0x118] sm:$0xff]
    %v252 = vld [vmem:[#allocation2 + $0x120] sm:$0xff]
    %v253 = vld [vmem:[#allocation2 + $0x128] sm:$0xff]
    %v254 = vld [vmem:[#allocation2 + $0x130] sm:$0xff]
    %v255 = vld [vmem:[#allocation2 + $0x138] sm:$0xff]
    %v256 = vld [vmem:[#allocation2 + $0x140] sm:$0xff]
    %v257 = vld [vmem:[#allocation2 + $0x148] sm:$0xff]
    %v258 = vld [vmem:[#allocation2 + $0x150] sm:$0xff]
    %v259 = vld [vmem:[#allocation2 + $0x158] sm:$0xff]
    %v260 = vld [vmem:[#allocation2 + $0x160] sm:$0xff]
    %v261 = vld [vmem:[#allocation2 + $0x168] sm:$0xff]
    %v262 = vld [vmem:[#allocation2 + $0x170] sm:$0xff]
    %v263 = vld [vmem:[#allocation2 + $0x178] sm:$0xff]
    %v264 = vld [vmem:[#allocation2 + $0x180] sm:$0xff]
    %v265 = vld [vmem:[#allocation2 + $0x188] sm:$0xff]
    %v266 = vld [vmem:[#allocation2 + $0x190] sm:$0xff]
    %v267 = vld [vmem:[#allocation2 + $0x198] sm:$0xff]
    %v268 = vld [vmem:[#allocation2 + $0x1a0] sm:$0xff]
    %v269 = vld [vmem:[#allocation2 + $0x1a8] sm:$0xff]
    %v270 = vld [vmem:[#allocation2 + $0x1b0] sm:$0xff]
    %v271 = vld [vmem:[#allocation2 + $0x1b8] sm:$0xff]
    %v272 = vld [vmem:[#allocation2 + $0x1c0] sm:$0xff]
    %v273 = vld [vmem:[#allocation2 + $0x1c8] sm:$0xff]
    %v274 = vld [vmem:[#allocation2 + $0x1d0] sm:$0xff]
    %v275 = vld [vmem:[#allocation2 + $0x1d8] sm:$0xff]
    %v276 = vld [vmem:[#allocation2 + $0x1e0] sm:$0xff]
    %v277 = vld [vmem:[#allocation2 + $0x1e8] sm:$0xff]
    %v278 = vld [vmem:[#allocation2 + $0x1f0] sm:$0xff]
    %v279 = vld [vmem:[#allocation2 + $0x1f8] sm:$0xff]
    %v280 = vld [vmem:[%s4] sm:$0x3]
    %v282 = vlaneseq
    %v283 = vshrl.u32 %v282, 7
    %v284 = vsub.s32 0, %v283
    %v285 = vrot.slane %v280, %v284
    %v286 = vlaneseq
    %v287 = vshrl.u32 %v286, 7
    %v288 = vsub.s32 1, %v287
    %v289 = vrot.slane %v280, %v288
    %v356 = vunpack.c.l.b16 %v216
    %v357 = vunpack.c.h.b16 %v216
    %v358 = vunpack.c.l.b16 %v217
    %v359 = vunpack.c.h.b16 %v217
    %v360 = vunpack.c.l.b16 %v218
    %v361 = vunpack.c.h.b16 %v218
    %v362 = vunpack.c.l.b16 %v219
    %v363 = vunpack.c.h.b16 %v219
    %v364 = vunpack.c.l.b16 %v220
    %v365 = vunpack.c.h.b16 %v220
    %v366 = vunpack.c.l.b16 %v221
    %v367 = vunpack.c.h.b16 %v221
    %v368 = vunpack.c.l.b16 %v222
    %v369 = vunpack.c.h.b16 %v222
    %v370 = vunpack.c.l.b16 %v223
    %v371 = vunpack.c.h.b16 %v223
    %v372 = vunpack.c.l.b16 %v224
    %v373 = vunpack.c.h.b16 %v224
    %v374 = vunpack.c.l.b16 %v225
    %v375 = vunpack.c.h.b16 %v225
    %v376 = vunpack.c.l.b16 %v226
    %v377 = vunpack.c.h.b16 %v226
    %v378 = vunpack.c.l.b16 %v227
    %v379 = vunpack.c.h.b16 %v227
    %v380 = vunpack.c.l.b16 %v228
    %v381 = vunpack.c.h.b16 %v228
    %v382 = vunpack.c.l.b16 %v229
    %v383 = vunpack.c.h.b16 %v229
    %v384 = vunpack.c.l.b16 %v230
    %v385 = vunpack.c.h.b16 %v230
    %v386 = vunpack.c.l.b16 %v231
    %v387 = vunpack.c.h.b16 %v231
    %v388 = vunpack.c.l.b16 %v232
    %v389 = vunpack.c.h.b16 %v232
    %v390 = vunpack.c.l.b16 %v233
    %v391 = vunpack.c.h.b16 %v233
    %v392 = vunpack.c.l.b16 %v234
    %v393 = vunpack.c.h.b16 %v234
    %v394 = vunpack.c.l.b16 %v235
    %v395 = vunpack.c.h.b16 %v235
    %v396 = vunpack.c.l.b16 %v236
    %v397 = vunpack.c.h.b16 %v236
    %v398 = vunpack.c.l.b16 %v237
    %v399 = vunpack.c.h.b16 %v237
    %v400 = vunpack.c.l.b16 %v238
    %v401 = vunpack.c.h.b16 %v238
    %v402 = vunpack.c.l.b16 %v239
    %v403 = vunpack.c.h.b16 %v239
    %v404 = vunpack.c.l.b16 %v240
    %v405 = vunpack.c.h.b16 %v240
    %v406 = vunpack.c.l.b16 %v241
    %v407 = vunpack.c.h.b16 %v241
    %v408 = vunpack.c.l.b16 %v242
    %v409 = vunpack.c.h.b16 %v242
    %v410 = vunpack.c.l.b16 %v243
    %v411 = vunpack.c.h.b16 %v243
    %v412 = vunpack.c.l.b16 %v244
    %v413 = vunpack.c.h.b16 %v244
    %v414 = vunpack.c.l.b16 %v245
    %v415 = vunpack.c.h.b16 %v245
    %v416 = vunpack.c.l.b16 %v246
    %v417 = vunpack.c.h.b16 %v246
    %v418 = vunpack.c.l.b16 %v247
    %v419 = vunpack.c.h.b16 %v247
    %v420 = vunpack.c.l.b16 %v248
    %v421 = vunpack.c.h.b16 %v248
    %v422 = vunpack.c.l.b16 %v249
    %v423 = vunpack.c.h.b16 %v249
    %v424 = vunpack.c.l.b16 %v250
    %v425 = vunpack.c.h.b16 %v250
    %v426 = vunpack.c.l.b16 %v251
    %v427 = vunpack.c.h.b16 %v251
    %v428 = vunpack.c.l.b16 %v252
    %v429 = vunpack.c.h.b16 %v252
    %v430 = vunpack.c.l.b16 %v253
    %v431 = vunpack.c.h.b16 %v253
    %v432 = vunpack.c.l.b16 %v254
    %v433 = vunpack.c.h.b16 %v254
    %v434 = vunpack.c.l.b16 %v255
    %v435 = vunpack.c.h.b16 %v255
    %v436 = vunpack.c.l.b16 %v256
    %v437 = vunpack.c.h.b16 %v256
    %v438 = vunpack.c.l.b16 %v257
    %v439 = vunpack.c.h.b16 %v257
    %v440 = vunpack.c.l.b16 %v258
    %v441 = vunpack.c.h.b16 %v258
    %v442 = vunpack.c.l.b16 %v259
    %v443 = vunpack.c.h.b16 %v259
    %v444 = vunpack.c.l.b16 %v260
    %v445 = vunpack.c.h.b16 %v260
    %v446 = vunpack.c.l.b16 %v261
    %v447 = vunpack.c.h.b16 %v261
    %v448 = vunpack.c.l.b16 %v262
    %v449 = vunpack.c.h.b16 %v262
    %v450 = vunpack.c.l.b16 %v263
    %v451 = vunpack.c.h.b16 %v263
    %v452 = vunpack.c.l.b16 %v264
    %v453 = vunpack.c.h.b16 %v264
    %v454 = vunpack.c.l.b16 %v265
    %v455 = vunpack.c.h.b16 %v265
    %v456 = vunpack.c.l.b16 %v266
    %v457 = vunpack.c.h.b16 %v266
    %v458 = vunpack.c.l.b16 %v267
    %v459 = vunpack.c.h.b16 %v267
    %v460 = vunpack.c.l.b16 %v268
    %v461 = vunpack.c.h.b16 %v268
    %v462 = vunpack.c.l.b16 %v269
    %v463 = vunpack.c.h.b16 %v269
    %v464 = vunpack.c.l.b16 %v270
    %v465 = vunpack.c.h.b16 %v270
    %v466 = vunpack.c.l.b16 %v271
    %v467 = vunpack.c.h.b16 %v271
    %v468 = vunpack.c.l.b16 %v272
    %v469 = vunpack.c.h.b16 %v272
    %v470 = vunpack.c.l.b16 %v273
    %v471 = vunpack.c.h.b16 %v273
    %v472 = vunpack.c.l.b16 %v274
    %v473 = vunpack.c.h.b16 %v274
    %v474 = vunpack.c.l.b16 %v275
    %v475 = vunpack.c.h.b16 %v275
    %v476 = vunpack.c.l.b16 %v276
    %v477 = vunpack.c.h.b16 %v276
    %v478 = vunpack.c.l.b16 %v277
    %v479 = vunpack.c.h.b16 %v277
    %v480 = vunpack.c.l.b16 %v278
    %v481 = vunpack.c.h.b16 %v278
    %v482 = vunpack.c.l.b16 %v279
    %v483 = vunpack.c.h.b16 %v279
    %v484 = vpack.c.b16 %v358, %v356
    %v485 = vpack.c.b16 %v359, %v357
    %v486 = vpack.c.b16 %v362, %v360
    %v487 = vpack.c.b16 %v363, %v361
    %v488 = vpack.c.b16 %v366, %v364
    %v489 = vpack.c.b16 %v367, %v365
    %v490 = vpack.c.b16 %v370, %v368
    %v491 = vpack.c.b16 %v371, %v369
    %v492 = vpack.c.b16 %v374, %v372
    %v493 = vpack.c.b16 %v375, %v373
    %v494 = vpack.c.b16 %v378, %v376
    %v495 = vpack.c.b16 %v379, %v377
    %v496 = vpack.c.b16 %v382, %v380
    %v497 = vpack.c.b16 %v383, %v381
    %v498 = vpack.c.b16 %v386, %v384
    %v499 = vpack.c.b16 %v387, %v385
    %v500 = vpack.c.b16 %v390, %v388
    %v501 = vpack.c.b16 %v391, %v389
    %v502 = vpack.c.b16 %v394, %v392
    %v503 = vpack.c.b16 %v395, %v393
    %v504 = vpack.c.b16 %v398, %v396
    %v505 = vpack.c.b16 %v399, %v397
    %v506 = vpack.c.b16 %v402, %v400
    %v507 = vpack.c.b16 %v403, %v401
    %v508 = vpack.c.b16 %v406, %v404
    %v509 = vpack.c.b16 %v407, %v405
    %v510 = vpack.c.b16 %v410, %v408
    %v511 = vpack.c.b16 %v411, %v409
    %v512 = vpack.c.b16 %v414, %v412
    %v513 = vpack.c.b16 %v415, %v413
    %v514 = vpack.c.b16 %v418, %v416
    %v515 = vpack.c.b16 %v419, %v417
    %v516 = vpack.c.b16 %v422, %v420
    %v517 = vpack.c.b16 %v423, %v421
    %v518 = vpack.c.b16 %v426, %v424
    %v519 = vpack.c.b16 %v427, %v425
    %v520 = vpack.c.b16 %v430, %v428
    %v521 = vpack.c.b16 %v431, %v429
    %v522 = vpack.c.b16 %v434, %v432
    %v523 = vpack.c.b16 %v435, %v433
    %v524 = vpack.c.b16 %v438, %v436
    %v525 = vpack.c.b16 %v439, %v437
    %v526 = vpack.c.b16 %v442, %v440
    %v527 = vpack.c.b16 %v443, %v441
    %v528 = vpack.c.b16 %v446, %v444
    %v529 = vpack.c.b16 %v447, %v445
    %v530 = vpack.c.b16 %v450, %v448
    %v531 = vpack.c.b16 %v451, %v449
    %v532 = vpack.c.b16 %v454, %v452
    %v533 = vpack.c.b16 %v455, %v453
    %v534 = vpack.c.b16 %v458, %v456
    %v535 = vpack.c.b16 %v459, %v457
    %v536 = vpack.c.b16 %v462, %v460
    %v537 = vpack.c.b16 %v463, %v461
    %v538 = vpack.c.b16 %v466, %v464
    %v539 = vpack.c.b16 %v467, %v465
    %v540 = vpack.c.b16 %v470, %v468
    %v541 = vpack.c.b16 %v471, %v469
    %v542 = vpack.c.b16 %v474, %v472
    %v543 = vpack.c.b16 %v475, %v473
    %v544 = vpack.c.b16 %v478, %v476
    %v545 = vpack.c.b16 %v479, %v477
    %v546 = vpack.c.b16 %v482, %v480
    %v547 = vpack.c.b16 %v483, %v481
    %612 = vmatprep.subr.bf16.mxu0 %v485
    %613 = vmatpush1.bf16.msra.mxu0 %v484
    %614 = vmatprep.subr.bf16.mxu0 %v487
    %615 = vmatpush1.bf16.msra.mxu0 %v486
    %616 = vmatprep.subr.bf16.mxu0 %v489
    %617 = vmatpush1.bf16.msra.mxu0 %v488
    %618 = vmatprep.subr.bf16.mxu0 %v491
    %619 = vmatpush1.bf16.msra.mxu0 %v490
    %620 = vmatprep.subr.bf16.mxu0 %v493
    %621 = vmatpush1.bf16.msra.mxu0 %v492
    %622 = vmatprep.subr.bf16.mxu0 %v495
    %623 = vmatpush1.bf16.msra.mxu0 %v494
    %624 = vmatprep.subr.bf16.mxu0 %v497
    %625 = vmatpush1.bf16.msra.mxu0 %v496
    %626 = vmatprep.subr.bf16.mxu0 %v499
    %627 = vmatpush1.bf16.msra.mxu0 %v498
    %628 = vmatprep.subr.bf16.mxu0 %v501
    %629 = vmatpush1.bf16.msra.mxu0 %v500
    %630 = vmatprep.subr.bf16.mxu0 %v503
    %631 = vmatpush1.bf16.msra.mxu0 %v502
    %632 = vmatprep.subr.bf16.mxu0 %v505
    %633 = vmatpush1.bf16.msra.mxu0 %v504
    %634 = vmatprep.subr.bf16.mxu0 %v507
    %635 = vmatpush1.bf16.msra.mxu0 %v506
    %636 = vmatprep.subr.bf16.mxu0 %v509
    %637 = vmatpush1.bf16.msra.mxu0 %v508
    %638 = vmatprep.subr.bf16.mxu0 %v511
    %639 = vmatpush1.bf16.msra.mxu0 %v510
    %640 = vmatprep.subr.bf16.mxu0 %v513
    %641 = vmatpush1.bf16.msra.mxu0 %v512
    %642 = vmatprep.subr.bf16.mxu0 %v515
    %643 = vmatpush1.bf16.msra.mxu0 %v514
    %644 = vmatprep.mubr.bf16.mxu0 %v213
    %645 = vmatmul.mubr.bf16.gmra.mrb[0].mxu0 %v212
    %v646 = vpop.f32.mrb[0].mxu0
    %v647 = vadd.f32 %v285, %v646
    %v648 = vpop.f32.mrb[0].mxu0
    %v649 = vadd.f32 %v289, %v648
    %v650 = vpop.f32.mrb[0].mxu0
    %v651 = vadd.f32 %v285, %v650
    %v652 = vpop.f32.mrb[0].mxu0
    %v653 = vadd.f32 %v289, %v652
    %654 = vdwg.mxu0
    %655 = vmatprep.subr.bf16.mxu0 %v517
    %656 = vmatpush1.bf16.msra.mxu0 %v516
    %657 = vmatprep.subr.bf16.mxu0 %v519
    %658 = vmatpush1.bf16.msra.mxu0 %v518
    %659 = vmatprep.subr.bf16.mxu0 %v521
    %660 = vmatpush1.bf16.msra.mxu0 %v520
    %661 = vmatprep.subr.bf16.mxu0 %v523
    %662 = vmatpush1.bf16.msra.mxu0 %v522
    %663 = vmatprep.subr.bf16.mxu0 %v525
    %664 = vmatpush1.bf16.msra.mxu0 %v524
    %665 = vmatprep.subr.bf16.mxu0 %v527
    %666 = vmatpush1.bf16.msra.mxu0 %v526
    %667 = vmatprep.subr.bf16.mxu0 %v529
    %668 = vmatpush1.bf16.msra.mxu0 %v528
    %669 = vmatprep.subr.bf16.mxu0 %v531
    %670 = vmatpush1.bf16.msra.mxu0 %v530
    %671 = vmatprep.subr.bf16.mxu0 %v533
    %672 = vmatpush1.bf16.msra.mxu0 %v532
    %673 = vmatprep.subr.bf16.mxu0 %v535
    %674 = vmatpush1.bf16.msra.mxu0 %v534
    %675 = vmatprep.subr.bf16.mxu0 %v537
    %676 = vmatpush1.bf16.msra.mxu0 %v536
    %677 = vmatprep.subr.bf16.mxu0 %v539
    %678 = vmatpush1.bf16.msra.mxu0 %v538
    %679 = vmatprep.subr.bf16.mxu0 %v541
    %680 = vmatpush1.bf16.msra.mxu0 %v540
    %681 = vmatprep.subr.bf16.mxu0 %v543
    %682 = vmatpush1.bf16.msra.mxu0 %v542
    %683 = vmatprep.subr.bf16.mxu0 %v545
    %684 = vmatpush1.bf16.msra.mxu0 %v544
    %685 = vmatprep.subr.bf16.mxu0 %v547
    %686 = vmatpush1.bf16.msra.mxu0 %v546
    %687 = vmatprep.mubr.bf16.mxu0 %v215
    %688 = vmatmul.mubr.bf16.gmra.mrb[0].mxu0 %v214
    %v689 = vpop.f32.mrb[0].mxu0
    %v690 = vadd.f32 %v647, %v689
    %v691 = vpop.f32.mrb[0].mxu0
    %v692 = vadd.f32 %v649, %v691
    %v693 = vpop.f32.mrb[0].mxu0
    %v694 = vadd.f32 %v651, %v693
    %v695 = vpop.f32.mrb[0].mxu0
    %v696 = vadd.f32 %v653, %v695
    %697 = vdwg.mxu0
    %v698 = vmax.f32 %v690, 0.0
    %v699 = vmax.f32 %v692, 0.0
    %v700 = vmax.f32 %v694, 0.0
    %v701 = vmax.f32 %v696, 0.0
    %v702 = vpack.c.bf16 %v700, %v698
    %v703 = vpack.c.bf16 %v701, %v699
    %v704 = vld [vmem:[%s5] sm:$0xf]
    %v705 = vld [vmem:[%s5 + $0x4] sm:$0xf]
    %v706 = vld [vmem:[%s5 + $0x8] sm:$0xf]
    %v707 = vld [vmem:[%s5 + $0xc] sm:$0xf]
    %v708 = vld [vmem:[%s5 + $0x10] sm:$0xf]
    %v709 = vld [vmem:[%s5 + $0x14] sm:$0xf]
    %v710 = vld [vmem:[%s5 + $0x18] sm:$0xf]
    %v711 = vld [vmem:[%s5 + $0x1c] sm:$0xf]
    %v712 = vld [vmem:[%s5 + $0x20] sm:$0xf]
    %v713 = vld [vmem:[%s5 + $0x24] sm:$0xf]
    %v714 = vld [vmem:[%s5 + $0x28] sm:$0xf]
    %v715 = vld [vmem:[%s5 + $0x2c] sm:$0xf]
    %v716 = vld [vmem:[%s5 + $0x30] sm:$0xf]
    %v717 = vld [vmem:[%s5 + $0x34] sm:$0xf]
    %v718 = vld [vmem:[%s5 + $0x38] sm:$0xf]
    %v719 = vld [vmem:[%s5 + $0x3c] sm:$0xf]
    %v720 = vld [vmem:[%s5 + $0x40] sm:$0xf]
    %v721 = vld [vmem:[%s5 + $0x44] sm:$0xf]
    %v722 = vld [vmem:[%s5 + $0x48] sm:$0xf]
    %v723 = vld [vmem:[%s5 + $0x4c] sm:$0xf]
    %v724 = vld [vmem:[%s5 + $0x50] sm:$0xf]
    %v725 = vld [vmem:[%s5 + $0x54] sm:$0xf]
    %v726 = vld [vmem:[%s5 + $0x58] sm:$0xf]
    %v727 = vld [vmem:[%s5 + $0x5c] sm:$0xf]
    %v728 = vld [vmem:[%s5 + $0x60] sm:$0xf]
    %v729 = vld [vmem:[%s5 + $0x64] sm:$0xf]
    %v730 = vld [vmem:[%s5 + $0x68] sm:$0xf]
    %v731 = vld [vmem:[%s5 + $0x6c] sm:$0xf]
    %v732 = vld [vmem:[%s5 + $0x70] sm:$0xf]
    %v733 = vld [vmem:[%s5 + $0x74] sm:$0xf]
    %v734 = vld [vmem:[%s5 + $0x78] sm:$0xf]
    %v735 = vld [vmem:[%s5 + $0x7c] sm:$0xf]
    %v736 = vld [vmem:[%s6] sm:$0x1]
    %v738 = vlaneseq
    %v739 = vshrl.u32 %v738, 7
    %v740 = vsub.s32 0, %v739
    %v741 = vrot.slane %v736, %v740
    %v775 = vunpack.c.l.b16 %v704
    %v776 = vunpack.c.l.b16 %v705
    %v777 = vunpack.c.l.b16 %v706
    %v778 = vunpack.c.l.b16 %v707
    %v779 = vunpack.c.l.b16 %v708
    %v780 = vunpack.c.l.b16 %v709
    %v781 = vunpack.c.l.b16 %v710
    %v782 = vunpack.c.l.b16 %v711
    %v783 = vunpack.c.l.b16 %v712
    %v784 = vunpack.c.l.b16 %v713
    %v785 = vunpack.c.l.b16 %v714
    %v786 = vunpack.c.l.b16 %v715
    %v787 = vunpack.c.l.b16 %v716
    %v788 = vunpack.c.l.b16 %v717
    %v789 = vunpack.c.l.b16 %v718
    %v790 = vunpack.c.l.b16 %v719
    %v791 = vunpack.c.l.b16 %v720
    %v792 = vunpack.c.l.b16 %v721
    %v793 = vunpack.c.l.b16 %v722
    %v794 = vunpack.c.l.b16 %v723
    %v795 = vunpack.c.l.b16 %v724
    %v796 = vunpack.c.l.b16 %v725
    %v797 = vunpack.c.l.b16 %v726
    %v798 = vunpack.c.l.b16 %v727
    %v799 = vunpack.c.l.b16 %v728
    %v800 = vunpack.c.l.b16 %v729
    %v801 = vunpack.c.l.b16 %v730
    %v802 = vunpack.c.l.b16 %v731
    %v803 = vunpack.c.l.b16 %v732
    %v804 = vunpack.c.l.b16 %v733
    %v805 = vunpack.c.l.b16 %v734
    %v806 = vunpack.c.l.b16 %v735
    %v807 = vpack.c.b16 %v776, %v775
    %v808 = vpack.c.b16 %v778, %v777
    %v809 = vpack.c.b16 %v780, %v779
    %v810 = vpack.c.b16 %v782, %v781
    %v811 = vpack.c.b16 %v784, %v783
    %v812 = vpack.c.b16 %v786, %v785
    %v813 = vpack.c.b16 %v788, %v787
    %v814 = vpack.c.b16 %v790, %v789
    %v815 = vpack.c.b16 %v792, %v791
    %v816 = vpack.c.b16 %v794, %v793
    %v817 = vpack.c.b16 %v796, %v795
    %v818 = vpack.c.b16 %v798, %v797
    %v819 = vpack.c.b16 %v800, %v799
    %v820 = vpack.c.b16 %v802, %v801
    %v821 = vpack.c.b16 %v804, %v803
    %v822 = vpack.c.b16 %v806, %v805
    %839 = vmatprep.subr.bf16.mxu0 0
    %840 = vmatpush1.bf16.msra.mxu0 %v807
    %841 = vmatprep.subr.bf16.mxu0 0
    %842 = vmatpush1.bf16.msra.mxu0 %v808
    %843 = vmatprep.subr.bf16.mxu0 0
    %844 = vmatpush1.bf16.msra.mxu0 %v809
    %845 = vmatprep.subr.bf16.mxu0 0
    %846 = vmatpush1.bf16.msra.mxu0 %v810
    %847 = vmatprep.subr.bf16.mxu0 0
    %848 = vmatpush1.bf16.msra.mxu0 %v811
    %849 = vmatprep.subr.bf16.mxu0 0
    %850 = vmatpush1.bf16.msra.mxu0 %v812
    %851 = vmatprep.subr.bf16.mxu0 0
    %852 = vmatpush1.bf16.msra.mxu0 %v813
    %853 = vmatprep.subr.bf16.mxu0 0
    %854 = vmatpush1.bf16.msra.mxu0 %v814
    %855 = vmatprep.subr.bf16.mxu0 0
    %856 = vmatpush1.bf16.msra.mxu0 %v815
    %857 = vmatprep.subr.bf16.mxu0 0
    %858 = vmatpush1.bf16.msra.mxu0 %v816
    %859 = vmatprep.subr.bf16.mxu0 0
    %860 = vmatpush1.bf16.msra.mxu0 %v817
    %861 = vmatprep.subr.bf16.mxu0 0
    %862 = vmatpush1.bf16.msra.mxu0 %v818
    %863 = vmatprep.subr.bf16.mxu0 0
    %864 = vmatpush1.bf16.msra.mxu0 %v819
    %865 = vmatprep.subr.bf16.mxu0 0
    %866 = vmatpush1.bf16.msra.mxu0 %v820
    %867 = vmatprep.subr.bf16.mxu0 0
    %868 = vmatpush1.bf16.msra.mxu0 %v821
    %869 = vmatprep.subr.bf16.mxu0 0
    %870 = vmatpush1.bf16.msra.mxu0 %v822
    %871 = vmatprep.mubr.bf16.mxu0 %v703
    %872 = vmatmul.mubr.bf16.gmra.mrb[0].mxu0 %v702
    %v873 = vpop.f32.mrb[0].mxu0
    %v874 = vadd.f32 %v741, %v873
    %v875 = vpop.f32.mrb[0].mxu0
    %v876 = vpop.f32.mrb[0].mxu0
    %v877 = vadd.f32 %v741, %v876
    %v878 = vpop.f32.mrb[0].mxu0
    %879 = vdwg.mxu0
    %vm880 = vcmask 64512
    %881 = vst.msk [vmem:[%s7] sm:$0xff] %vm880, %v874
    %882 = vst.msk [vmem:[%s7 + $0x8] sm:$0xff] %vm880, %v877
    // Predicated region
    $region34: #{tpu_custom_call.1} parent=1 // pred_check
      _
    $region35: #{tpu_custom_call.1} parent=1 // pred_check_branch
      %884 = sbr.rel (0) target = $region37
    $region36: #{tpu_custom_call.1} parent=1 // pred_region
      _
    $region37: #{tpu_custom_call.1} parent=1 // pred_fallthru
      _
    // Predicated region
    $region38: #{tpu_custom_call.1} parent=1 // pred_check
      _
    $region39: #{tpu_custom_call.1} parent=1 // pred_check_branch
      %886 = sbr.rel (0) target = $region41
    $region40: #{tpu_custom_call.1} parent=1 // pred_region
      _
    $region41: #{tpu_custom_call.1} parent=1 // pred_fallthru
      _
    %887 = vsyncpa [#allocation3], 1

</llo_original>
